<compile_context>
chip_gen: v7x
topology: tpu7x:2x2x1
jax: 0.10.0
libtpu: 0.0.40
codegen_flags: <defaults>
</compile_context>

<pallas_src>
import jax
import jax.numpy as jnp
from jax.experimental import pallas as pl
from jax.experimental.pallas import tpu as pltpu

_LANE = 128
_SUBLANE = 8


def _round_up(n, m):
    return ((n + m - 1) // m) * m


def _fourier_pe_kernel(x_ref, c_ref, o_ref):
    # One MXU matmul (omega0 & bias already folded into C) + sin epilogue.
    # sin lowers to a VPU polynomial; compute in f32, cast on store.
    z = jnp.dot(x_ref[...], c_ref[...], preferred_element_type=jnp.float32)
    o_ref[...] = jnp.sin(z).astype(o_ref.dtype)


def _choose_tiles(N, M_pad, out_elem_bytes):
    """VMEM-budget-aware (tn, tm) selection."""
    # Tile M only when an untiled C/out stripe would stress scoped VMEM.
    tm = M_pad if M_pad <= 2048 else 1024
    # Target ~6 MiB of output per grid step.  The x tile occupies
    # tn * 128 * 4 B in VMEM (narrow Dc axis padded to a full lane row), so
    # fold that inflation into the per-row budget too.
    target_bytes = 6 << 20
    per_row_bytes = tm * out_elem_bytes + _LANE * 4
    tn = target_bytes // per_row_bytes
    tn = _round_up(min(max(int(tn), 256), 8192), _LANE)
    if N <= tn:
        tn = N  # single row block; block dims == full array dims is legal
    return tn, tm


def _fourier_pe_call(x2d, C, M, out_dtype):
    """x2d: (N, D) f32; C: (D+1, M_pad) f32 fused weights.  Returns (N, M)."""
    N, D = x2d.shape
    Dc, M_pad = C.shape
    out_elem_bytes = jnp.dtype(out_dtype).itemsize

    # Ones column carries the (already omega0-scaled) bias through the matmul.
    x_aug = jnp.concatenate([x2d, jnp.ones((N, 1), jnp.float32)], axis=1)

    tn, tm = _choose_tiles(N, M_pad, out_elem_bytes)
    grid = (pl.cdiv(N, tn), pl.cdiv(M_pad, tm))

    # Explicit scoped-VMEM limit from the actual (double-buffered) tile
    # footprint plus slack; stays well inside every TPU generation.
    x_tile = _round_up(tn, _SUBLANE) * _LANE * 4          # lane-padded x rows
    c_tile = _round_up(Dc, _SUBLANE) * tm * 4
    o_tile = _round_up(tn, _SUBLANE) * tm * out_elem_bytes
    vmem_limit = int(min(max(2 * (x_tile + c_tile + o_tile) + (2 << 20),
                             8 << 20), 32 << 20))

    cost = pl.CostEstimate(
        flops=2 * N * Dc * M_pad,
        transcendentals=N * M_pad,
        bytes_accessed=(x_aug.size * 4 + C.size * 4
                        + N * M_pad * out_elem_bytes),
    )

    out = pl.pallas_call(
        _fourier_pe_kernel,
        out_shape=jax.ShapeDtypeStruct((N, M_pad), out_dtype),
        grid_spec=pltpu.PrefetchScalarGridSpec(
            num_scalar_prefetch=0,
            grid=grid,
            in_specs=[
                pl.BlockSpec((tn, Dc), lambda i, j: (i, 0)),   # x row tile
                pl.BlockSpec((Dc, tm), lambda i, j: (0, j)),   # fused weights
            ],
            out_specs=pl.BlockSpec((tn, tm), lambda i, j: (i, j)),
        ),
        compiler_params=pltpu.CompilerParams(
            dimension_semantics=("parallel", "parallel"),
            vmem_limit_bytes=vmem_limit),
        cost_estimate=cost,
    )(x_aug, C)

    # Only the M padding gets sliced off (identity when M % 128 == 0);
    # N is never padded, so there is no row slice / extra output copy.
    return out if M_pad == M else out[:, :M]


def _fuse_params(weight, bias, omega0):
    weight = jnp.asarray(weight, jnp.float32)
    M, D = weight.shape
    M_pad = _round_up(M, _LANE)
    C = jnp.zeros((D + 1, M_pad), jnp.float32)
    C = C.at[:D, :M].set(float(omega0) * weight.T)
    if bias is not None:
        C = C.at[D, :M].set(float(omega0) * jnp.asarray(bias, jnp.float32))
    return C, M


def make_fourier_pe(weight, bias=None, omega0=1.0, out_dtype=jnp.float32):
    """Precompute the fused weights once; return a jitted forward.

    forward(x): (..., input_dim) -> (..., num_atoms), matching
    FourierPE.forward = sin(omega0 * Linear(x)).
    """
    C, M = _fuse_params(weight, bias, omega0)
    D = weight.shape[1]

    @jax.jit
    def forward(x):
        x = jnp.asarray(x, jnp.float32)
        lead = x.shape[:-1]
        y = _fourier_pe_call(x.reshape(-1, D), C, M, out_dtype)
        return y.reshape(*lead, M)

    return forward


def fourier_pe(x, weight, bias=None, omega0=1.0, out_dtype=jnp.float32):
    """One-shot convenience wrapper (re-builds fused weights per call)."""
    C, M = _fuse_params(weight, bias, omega0)
    x = jnp.asarray(x, jnp.float32)
    lead = x.shape[:-1]
    y = _fourier_pe_call(x.reshape(-1, x.shape[-1]), C, M, out_dtype)
    return y.reshape(*lead, M)


def reference(x, weight, bias, omega0):
    z = jnp.asarray(x, jnp.float32) @ jnp.asarray(weight, jnp.float32).T
    if bias is not None:
        z = z + jnp.asarray(bias, jnp.float32)
    return jnp.sin(omega0 * z)


if __name__ == "__main__":
    key = jax.random.PRNGKey(0)
    k1, k2, k3, k4 = jax.random.split(key, 4)

    # Case 1: module defaults (bias=True), lane-dense num_atoms, small batch.
    num_atoms, input_dim, N, omega0 = 128, 3, 16, 30.0
    lim = 1.0 / input_dim
    W = jax.random.uniform(k1, (num_atoms, input_dim), jnp.float32, -lim, lim)
    b = jax.random.uniform(k2, (num_atoms,), jnp.float32, -lim, lim)
    x = jax.random.normal(k3, (N, input_dim), dtype=jnp.float32)

    pe = make_fourier_pe(W, b, omega0)        # C built once, forward jitted
    out = jax.block_until_ready(pe(x))
    ref = reference(x, W, b, omega0)
    assert out.shape == (N, num_atoms)
    assert jnp.allclose(out, ref, atol=1e-4, rtol=1e-4)

    # Case 2: ragged num_atoms and N, no bias — exercises M padding and
    # non-aligned row blocks (no N padding, no post-kernel row slice).
    M2, N2 = 100, 13
    W2 = jax.random.uniform(k4, (M2, input_dim), jnp.float32, -lim, lim)
    x2 = jax.random.normal(k2, (N2, input_dim), dtype=jnp.float32)
    out2 = jax.block_until_ready(fourier_pe(x2, W2, None, 1.0))
    ref2 = reference(x2, W2, None, 1.0)
    assert out2.shape == (N2, M2)
    assert jnp.allclose(out2, ref2, atol=1e-4, rtol=1e-4)

    # Case 3: bf16 output path (halves output HBM traffic; sin still in f32).
    pe_bf16 = make_fourier_pe(W, b, omega0, out_dtype=jnp.bfloat16)
    out3 = jax.block_until_ready(pe_bf16(x))
    assert out3.dtype == jnp.bfloat16
    assert jnp.allclose(out3.astype(jnp.float32), ref, atol=2e-2, rtol=2e-2)

    print("KERNEL_OK")
</pallas_src>

<mosaic_0001>
module attributes {stable_mosaic.version = 11 : i64} {
  func.func @_fourier_pe_kernel(%arg0: i32, %arg1: i32, %arg2: memref<16x4xf32, #tpu.memory_space<vmem>>, %arg3: memref<4x128xf32, #tpu.memory_space<vmem>>, %arg4: memref<16x128xf32, #tpu.memory_space<vmem>>) attributes {dimension_semantics = [#tpu.dimension_semantics<parallel>, #tpu.dimension_semantics<parallel>], iteration_bounds = array<i64: 1, 1>, scalar_prefetch = 0 : i64, scratch_operands = 0 : i64, tpu.core_type = #tpu.core_type<tc>, window_params = [{transform_indices = @transform_0, window_bounds = array<i64: 16, 4>}, {transform_indices = @transform_1, window_bounds = array<i64: 4, 128>}, {transform_indices = @transform_2, window_bounds = array<i64: 16, 128>}]} {
    %c0 = arith.constant 0 : index
    %c0_0 = arith.constant 0 : index
    %0 = vector.load %arg2[%c0, %c0_0] : memref<16x4xf32, #tpu.memory_space<vmem>>, vector<16x4xf32>
    %c0_1 = arith.constant 0 : index
    %c0_2 = arith.constant 0 : index
    %1 = vector.load %arg3[%c0_1, %c0_2] : memref<4x128xf32, #tpu.memory_space<vmem>>, vector<4x128xf32>
    %cst = arith.constant dense<0.000000e+00> : vector<16x128xf32>
    %2 = tpu.matmul %0, %1, %cst {dimension_numbers = #tpu.dot_dimension_numbers<[1], [0], [0], [1], [0, 0, 1, 1], [], []>} : vector<16x4xf32>, vector<4x128xf32>, vector<16x128xf32> -> vector<16x128xf32>
    %3 = math.sin %2 : vector<16x128xf32>
    %c0_3 = arith.constant 0 : index
    %c0_4 = arith.constant 0 : index
    %4 = vector.load %arg4[%c0_3, %c0_4] : memref<16x128xf32, #tpu.memory_space<vmem>>, vector<16x128xf32>
    tpu.vector_store %arg4[%c0_3, %c0_4], %3 {strides = array<i32>} : memref<16x128xf32, #tpu.memory_space<vmem>>, vector<16x128xf32>,
    return
  }
  func.func @transform_0(%arg0: i32, %arg1: i32) -> (i32, i32) {
    %c0_i32 = arith.constant 0 : i32
    %c0_i32_0 = arith.constant 0 : i32
    return %arg0, %c0_i32 : i32, i32
  }
  func.func @transform_1(%arg0: i32, %arg1: i32) -> (i32, i32) {
    %c0_i32 = arith.constant 0 : i32
    %c0_i32_0 = arith.constant 0 : i32
    return %c0_i32, %arg1 : i32, i32
  }
  func.func @transform_2(%arg0: i32, %arg1: i32) -> (i32, i32) {
    %c0_i32 = arith.constant 0 : i32
    return %arg0, %arg1 : i32, i32
  }
}

</mosaic_0001>

<llo_original>
// kernel: forward.1
$region0: #{forward.1}
  #allocation0 [shape = 'u32[]', space=smem, size = 0x4, offset = 0x4, fixed_abs, tag = 'smem constant byte address 0x4 - core index']
  #allocation1 [shape = 'u32[144,128]{1,0:T(1,128)}', space=vmem, size = 0x12000, scoped, tag = 'internal scratch']
  %s0 = inlined_call_operand.vmem [shape: f32[16,4], index: 0, kind: input, shape index: {}]
  %s1 = inlined_call_operand.vmem [shape: f32[4,128], index: 1, kind: input, shape index: {}]
  %s2 = inlined_call_operand.hbm [shape: f32[16,128], index: 2, kind: output, shape index: {}]
  %s3 = sld [smem:[#allocation0]]
  $region18: #{forward.1} parent=0
    _
  %s5 = ssub.s32 1, %s3
  %s6 = scalar_select 0, %s5, %s3
  $region1: #{forward.1} parent=0
    #allocation2 [shape = 'u8[8192]{0}', space=vmem, size = 0x2000, scoped, tag = 'output window, operand 0, single buffered']
    #allocation3 [shape = 's32[1]{0}', space=sflag, size = 0x4, scoped, tag = 'scoped memory for forward.1']
    %7 = vsyncpa [#allocation3], 0
    // Predicated region
    $region2: #{forward.1} parent=1 // pred_check
      _
    $region3: #{forward.1} parent=1 // pred_check_branch
      %9 = sbr.rel (0) target = $region5
    $region4: #{forward.1} parent=1 // pred_region
      _
    $region5: #{forward.1} parent=1 // pred_fallthru
      _
    // Predicated region
    $region6: #{forward.1} parent=1 // pred_check
      _
    $region7: #{forward.1} parent=1 // pred_check_branch
      %11 = sbr.rel (0) target = $region9
    $region8: #{forward.1} parent=1 // pred_region
      _
    $region9: #{forward.1} parent=1 // pred_fallthru
      _
    %v12 = vld [vmem:[%s0] sm:$0xff]
    %v13 = vld [vmem:[%s0 + $0x8] sm:$0xff]
    %v14 = vld [vmem:[%s1] sm:$0xf]
    %vm15 = vcmask 31744
    %v17 = vsel %vm15, %v12, 0
    %v20 = vsel %vm15, %v13, 0
    %vm22 = vcmask 1043456
    %v24 = vsel %vm22, %v14, 0
    %26 = vmatprep.subr.mxu0 0.0
    %27 = vmatpush1.msra.mxu0 %v24
    %28 = vmatprep.subr.mxu0 0.0
    %29 = vmatpush1.msra.mxu0 0.0
    %30 = vmatprep.subr.mxu0 0.0
    %31 = vmatpush1.msra.mxu0 0.0
    %32 = vmatprep.subr.mxu0 0.0
    %33 = vmatpush1.msra.mxu0 0.0
    %34 = vmatprep.subr.mxu0 0.0
    %35 = vmatpush1.msra.mxu0 0.0
    %36 = vmatprep.subr.mxu0 0.0
    %37 = vmatpush1.msra.mxu0 0.0
    %38 = vmatprep.subr.mxu0 0.0
    %39 = vmatpush1.msra.mxu0 0.0
    %40 = vmatprep.subr.mxu0 0.0
    %41 = vmatpush1.msra.mxu0 0.0
    %42 = vmatprep.subr.mxu0 0.0
    %43 = vmatpush1.msra.mxu0 0.0
    %44 = vmatprep.subr.mxu0 0.0
    %45 = vmatpush1.msra.mxu0 0.0
    %46 = vmatprep.subr.mxu0 0.0
    %47 = vmatpush1.msra.mxu0 0.0
    %48 = vmatprep.subr.mxu0 0.0
    %49 = vmatpush1.msra.mxu0 0.0
    %50 = vmatprep.subr.mxu0 0.0
    %51 = vmatpush1.msra.mxu0 0.0
    %52 = vmatprep.subr.mxu0 0.0
    %53 = vmatpush1.msra.mxu0 0.0
    %54 = vmatprep.subr.mxu0 0.0
    %55 = vmatpush1.msra.mxu0 0.0
    %56 = vmatprep.subr.mxu0 0.0
    %57 = vmatpush1.msra.mxu0 0.0
    %58 = vmatprep.subr.mxu0 0.0
    %59 = vmatpush1.msra.mxu0 0.0
    %60 = vmatprep.subr.mxu0 0.0
    %61 = vmatpush1.msra.mxu0 0.0
    %62 = vmatprep.subr.mxu0 0.0
    %63 = vmatpush1.msra.mxu0 0.0
    %64 = vmatprep.subr.mxu0 0.0
    %65 = vmatpush1.msra.mxu0 0.0
    %66 = vmatprep.subr.mxu0 0.0
    %67 = vmatpush1.msra.mxu0 0.0
    %68 = vmatprep.subr.mxu0 0.0
    %69 = vmatpush1.msra.mxu0 0.0
    %70 = vmatprep.subr.mxu0 0.0
    %71 = vmatpush1.msra.mxu0 0.0
    %72 = vmatprep.subr.mxu0 0.0
    %73 = vmatpush1.msra.mxu0 0.0
    %74 = vmatprep.subr.mxu0 0.0
    %75 = vmatpush1.msra.mxu0 0.0
    %76 = vmatprep.subr.mxu0 0.0
    %77 = vmatpush1.msra.mxu0 0.0
    %78 = vmatprep.subr.mxu0 0.0
    %79 = vmatpush1.msra.mxu0 0.0
    %80 = vmatprep.subr.mxu0 0.0
    %81 = vmatpush1.msra.mxu0 0.0
    %82 = vmatprep.subr.mxu0 0.0
    %83 = vmatpush1.msra.mxu0 0.0
    %84 = vmatprep.subr.mxu0 0.0
    %85 = vmatpush1.msra.mxu0 0.0
    %86 = vmatprep.subr.mxu0 0.0
    %87 = vmatpush1.msra.mxu0 0.0
    %88 = vmatprep.subr.mxu0 0.0
    %89 = vmatpush1.msra.mxu0 0.0
    %90 = vmatprep.mubr.f32.mxu0 0.0
    %91 = vmatmul.mubr.f32.gmra.mrb[0].mxu0 %v17
    %v92 = vpop.f32.mrb[0].mxu0
    %v93 = vadd.f32 0.0, %v92
    %v94 = vpop.f32.mrb[0].mxu0
    %95 = vmatprep.mubr.f32.mxu0 0.0
    %96 = vmatmul.mubr.f32.gmra.mrb[0].mxu0 %v20
    %v97 = vpop.f32.mrb[0].mxu0
    %v98 = vadd.f32 0.0, %v97
    %v99 = vpop.f32.mrb[0].mxu0
    %100 = vdwg.mxu0
    %v101 = vand.u32 2147483647, %v93
    %vm102 = vcmp.le.f32.partialorder %v101, 0.7853982
    %vm103 = vcmp.lt.s32.totalorder %v93, 0
    %v104 = vand.u32 %v93, 2139095040
    %v105 = vshrl.u32 %v104, 23
    %v106 = vsub.s32 %v105, 127
    %v107 = vand.u32 2147483647, %v93
    %v108 = vand.u32 %v107, 8388607
    %v109 = vor.u32 %v108, 8388608
    %v110 = vsub.s32 0, %v109
    %v111 = vadd.s32 %v106, 1
    %vm112 = vcmp.gt.s32.totalorder %v111, 0
    %v113 = vsel %vm112, %v111, 0
    %v114 = vshrl.u32 %v113, 5
    %v115 = vand.u32 %v113, 31
    %v116 = vsub.s32 32, %v115
    %v117 = vshrl.u32 683565275, %v116
    %v118 = vshll.u32 683565275, %v115
    %v119 = vshrl.u32 2475754826, %v116
    %v120 = vor.u32 %v118, %v119
    %v121 = vshll.u32 2475754826, %v115
    %v122 = vshrl.u32 2131351028, %v116
    %v123 = vor.u32 %v121, %v122
    %v124 = vshll.u32 2131351028, %v115
    %v125 = vshrl.u32 2102212464, %v116
    %v126 = vor.u32 %v124, %v125
    %v127 = vshll.u32 2102212464, %v115
    %v128 = vshrl.u32 920167782, %v116
    %v129 = vor.u32 %v127, %v128
    %v130 = vshll.u32 920167782, %v115
    %v131 = vshrl.u32 1326507024, %v116
    %v132 = vor.u32 %v130, %v131
    %vm133 = vcmp.lt.s32.totalorder %v114, 1
    %vm134 = vcmp.lt.s32.totalorder %v114, 2
    %vm135 = vcmp.lt.s32.totalorder %v114, 3
    %vm136 = vcmp.lt.s32.totalorder %v114, 4
    %v137 = vsel %vm133, %v117, %v120
    %v138 = vsel %vm136, %v126, 2102212464
    %v139 = vsel %vm135, %v123, %v138
    %v140 = vsel %vm134, %v137, %v139
    %v141 = vsel %vm133, %v120, %v123
    %v142 = vsel %vm136, %v129, 920167782
    %v143 = vsel %vm135, %v126, %v142
    %v144 = vsel %vm134, %v141, %v143
    %v145 = vsel %vm133, %v123, %v126
    %v146 = vsel %vm136, %v132, 1326507024
    %v147 = vsel %vm135, %v129, %v146
    %v148 = vsel %vm134, %v145, %v147
    %v149 = vshll.u32 %v109, 8
    %v150 = vmul.u32.u64.compose %v149, %v148
    %v151 = vextract.low.u32 %v150
    %v152 = vextract.high.u32 %v150
    %v153 = vmul.u32.u64.compose %v149, %v144
    %v154 = vextract.low.u32 %v153
    %v155 = vextract.high.u32 %v153
    %v156 = vmul.u32 %v149, %v140
    %v157 = vadd.s32 %v152, %v154
    %vm158 = vc.u32 %v152, %v154
    %v159 = vadd.s32 %v155, 1
    %v160 = vsel %vm158, %v159, %v155
    %v161 = vadd.s32 %v156, %v160
    %v162 = vadd.s32 %v161, 536870912
    %v163 = vshrl.u32 %v162, 30
    %v164 = vshll.u32 %v163, 30
    %v165 = vsub.s32 %v161, %v164
    %vm166 = vcmp.lt.s32.totalorder %v165, 0
    %v167 = vsub.s32 0, %v165
    %v168 = vsel %vm166, %v167, %v165
    %v169 = vclz %v168
    %v170 = vsub.s32 %v169, 2
    %vm171 = vcmp.gt.s32.totalorder 0, %v170
    %v172 = vsel %vm171, 0, %v170
    %v173 = vsub.s32 32, %v172
    %v174 = vshll.u32 %v165, %v172
    %v175 = vshrl.u32 %v157, %v173
    %v176 = vor.u32 %v174, %v175
    %v177 = vsub.s32 4294967266, %v172
    %v178 = vadd.s32 %v177, 127
    %v179 = vshll.u32 %v178, 23
    %v180 = vor.u32 4788187, %v179
    %v181 = vand.u32 2147483647, %v180
    %v183 = vcvt.s32.f32 %v176
    %v184 = vmul.f32 %v183, %v181
    %v185 = vxor.u32 %v184, 2147483648
    %v186 = vsel %vm103, %v185, %v184
    %v187 = vsub.s32 4, %v163
    %v188 = vsel %vm103, %v187, %v163
    %v189 = vsel %vm102, %v93, %v186
    %v190 = vsel %vm102, 0, %v188
    %v191 = vcosq.f32.pop %v189
    %v192 = vsinq.f32.pop %v189
    %vm193 = vweird.f32 %v93
    %v194 = vadd.s32 %v190, 3
    %v195 = vand.u32 %v194, 3
    %vm196 = vcmp.lt.s32.totalorder %v195, 2
    %vm197 = vcmp.eq.s32.totalorder %v195, 0
    %v198 = vxor.u32 %v192, 2147483648
    %v199 = vsel %vm197, %v191, %v198
    %vm200 = vcmp.eq.s32.totalorder %v195, 2
    %v201 = vxor.u32 %v191, 2147483648
    %v202 = vsel %vm200, %v201, %v192
    %v203 = vsel %vm196, %v199, %v202
    %v204 = vsel %vm193, nan, %v203
    %v205 = vand.u32 2147483647, %v98
    %vm206 = vcmp.le.f32.partialorder %v205, 0.7853982
    %vm207 = vcmp.lt.s32.totalorder %v98, 0
    %v208 = vand.u32 %v98, 2139095040
    %v209 = vshrl.u32 %v208, 23
    %v210 = vsub.s32 %v209, 127
    %v211 = vand.u32 2147483647, %v98
    %v212 = vand.u32 %v211, 8388607
    %v213 = vor.u32 %v212, 8388608
    %v214 = vsub.s32 0, %v213
    %v215 = vadd.s32 %v210, 1
    %vm216 = vcmp.gt.s32.totalorder %v215, 0
    %v217 = vsel %vm216, %v215, 0
    %v218 = vshrl.u32 %v217, 5
    %v219 = vand.u32 %v217, 31
    %v220 = vsub.s32 32, %v219
    %v221 = vshrl.u32 683565275, %v220
    %v222 = vshll.u32 683565275, %v219
    %v223 = vshrl.u32 2475754826, %v220
    %v224 = vor.u32 %v222, %v223
    %v225 = vshll.u32 2475754826, %v219
    %v226 = vshrl.u32 2131351028, %v220
    %v227 = vor.u32 %v225, %v226
    %v228 = vshll.u32 2131351028, %v219
    %v229 = vshrl.u32 2102212464, %v220
    %v230 = vor.u32 %v228, %v229
    %v231 = vshll.u32 2102212464, %v219
    %v232 = vshrl.u32 920167782, %v220
    %v233 = vor.u32 %v231, %v232
    %v234 = vshll.u32 920167782, %v219
    %v235 = vshrl.u32 1326507024, %v220
    %v236 = vor.u32 %v234, %v235
    %vm237 = vcmp.lt.s32.totalorder %v218, 1
    %vm238 = vcmp.lt.s32.totalorder %v218, 2
    %vm239 = vcmp.lt.s32.totalorder %v218, 3
    %vm240 = vcmp.lt.s32.totalorder %v218, 4
    %v241 = vsel %vm237, %v221, %v224
    %v242 = vsel %vm240, %v230, 2102212464
    %v243 = vsel %vm239, %v227, %v242
    %v244 = vsel %vm238, %v241, %v243
    %v245 = vsel %vm237, %v224, %v227
    %v246 = vsel %vm240, %v233, 920167782
    %v247 = vsel %vm239, %v230, %v246
    %v248 = vsel %vm238, %v245, %v247
    %v249 = vsel %vm237, %v227, %v230
    %v250 = vsel %vm240, %v236, 1326507024
    %v251 = vsel %vm239, %v233, %v250
    %v252 = vsel %vm238, %v249, %v251
    %v253 = vshll.u32 %v213, 8
    %v254 = vmul.u32.u64.compose %v253, %v252
    %v255 = vextract.low.u32 %v254
    %v256 = vextract.high.u32 %v254
    %v257 = vmul.u32.u64.compose %v253, %v248
    %v258 = vextract.low.u32 %v257
    %v259 = vextract.high.u32 %v257
    %v260 = vmul.u32 %v253, %v244
    %v261 = vadd.s32 %v256, %v258
    %vm262 = vc.u32 %v256, %v258
    %v263 = vadd.s32 %v259, 1
    %v264 = vsel %vm262, %v263, %v259
    %v265 = vadd.s32 %v260, %v264
    %v266 = vadd.s32 %v265, 536870912
    %v267 = vshrl.u32 %v266, 30
    %v268 = vshll.u32 %v267, 30
    %v269 = vsub.s32 %v265, %v268
    %vm270 = vcmp.lt.s32.totalorder %v269, 0
    %v271 = vsub.s32 0, %v269
    %v272 = vsel %vm270, %v271, %v269
    %v273 = vclz %v272
    %v274 = vsub.s32 %v273, 2
    %vm275 = vcmp.gt.s32.totalorder 0, %v274
    %v276 = vsel %vm275, 0, %v274
    %v277 = vsub.s32 32, %v276
    %v278 = vshll.u32 %v269, %v276
    %v279 = vshrl.u32 %v261, %v277
    %v280 = vor.u32 %v278, %v279
    %v281 = vsub.s32 4294967266, %v276
    %v282 = vadd.s32 %v281, 127
    %v283 = vshll.u32 %v282, 23
    %v284 = vor.u32 4788187, %v283
    %v285 = vand.u32 2147483647, %v284
    %v287 = vcvt.s32.f32 %v280
    %v288 = vmul.f32 %v287, %v285
    %v289 = vxor.u32 %v288, 2147483648
    %v290 = vsel %vm207, %v289, %v288
    %v291 = vsub.s32 4, %v267
    %v292 = vsel %vm207, %v291, %v267
    %v293 = vsel %vm206, %v98, %v290
    %v294 = vsel %vm206, 0, %v292
    %v295 = vcosq.f32.pop %v293
    %v296 = vsinq.f32.pop %v293
    %vm297 = vweird.f32 %v98
    %v298 = vadd.s32 %v294, 3
    %v299 = vand.u32 %v298, 3
    %vm300 = vcmp.lt.s32.totalorder %v299, 2
    %vm301 = vcmp.eq.s32.totalorder %v299, 0
    %v302 = vxor.u32 %v296, 2147483648
    %v303 = vsel %vm301, %v295, %v302
    %vm304 = vcmp.eq.s32.totalorder %v299, 2
    %v305 = vxor.u32 %v295, 2147483648
    %v306 = vsel %vm304, %v305, %v296
    %v307 = vsel %vm300, %v303, %v306
    %v308 = vsel %vm297, nan, %v307
    %309 = vst [vmem:[#allocation2] sm:$0xff] %v204
    %310 = vst [vmem:[#allocation2 + $0x8] sm:$0xff] %v308
    // Predicated region
    $region10: #{forward.1} parent=1 // pred_check
      _
    $region11: #{forward.1} parent=1 // pred_check_branch
      %312 = sbr.rel (0) target = $region13
    $region12: #{forward.1} parent=1 // pred_region
      %s314 = ssub.s32 256, 256
      %315 = vsyncadd [#allocation3], %s314
      %s316 = sshll.u32 [#allocation2], 4
      %s317 = int_to_ptr.vmem [resolvable:$true] %s316
      %322 = dma.vmem_to_hbm [thread:$0]  %s317, 256, %s2, [#allocation3], 128, 128, 8
    $region13: #{forward.1} parent=1 // pred_fallthru
      _
    // Predicated region
    $region14: #{forward.1} parent=1 // pred_check
      _
    $region15: #{forward.1} parent=1 // pred_check_branch
      %324 = sbr.rel (0) target = $region17
    $region16: #{forward.1} parent=1 // pred_region
      %325 = dma.done [#allocation3], 256
    $region17: #{forward.1} parent=1 // pred_fallthru
      _
    %326 = vsyncpa [#allocation3], 1

</llo_original>
